<compile_context>
chip_gen: v7x
topology: tpu7x:2x2x1
jax: 0.10.0
libtpu: 0.0.40
codegen_flags: <defaults>
</compile_context>

<pallas_src>
import jax
import jax.numpy as jnp
from jax.experimental import pallas as pl
from jax.experimental.pallas import tpu as pltpu


def deepmil_kernel(x_ref,        # (TB, N, D)   bag tile, instance-major (pre-transposed)
                   w1_ref,       # (D, A)       fc1 weight
                   wvu_ref,      # (A, 2D)      fused attention_V | attention_U weight
                   wa_ref,       # (D, 1)       attention_weights column
                   w2_ref,       # (A, H)       fc2 weight
                   wo_ref,       # (H, 1)       fc_out column
                   bias_ref,     # (1, A+2D+H)  packed [b1 | bv | bu | b2]
                   scal_ref,     # SMEM (2,)    [ba, bo]
                   out_ref):     # (1, 1, TB)
    TB, N, D = x_ref.shape
    A = w1_ref.shape[1]
    H = w2_ref.shape[1]
    f32 = jnp.float32

    bias = bias_ref[...]
    b1 = bias[:, :A]                       # (1, A)
    bvu = bias[:, A:A + 2 * D]             # (1, 2D)
    b2 = bias[:, A + 2 * D:]               # (1, H)
    ba = scal_ref[0]
    bo = scal_ref[1]

    # (TB, N, D) -> (TB*N, D): zero-cost collapse (transpose already done in wrapper).
    x2 = x_ref[...].reshape(TB * N, D)

    # fc1 and fused gated-attention projection as large 2D MXU matmuls.
    mil2 = jnp.dot(x2, w1_ref[...], preferred_element_type=f32) + b1           # (TB*N, A)
    vu = jnp.dot(mil2, wvu_ref[...], preferred_element_type=f32) + bvu         # (TB*N, 2D)
    gated = jnp.tanh(vu[:, :D]) * jax.nn.sigmoid(vu[:, D:])                    # (TB*N, D)

    # Attention logits (single-column matmul), softmax over the N instances per bag.
    logits = (jnp.dot(gated, wa_ref[...], preferred_element_type=f32)
              + ba).reshape(TB, N)                                             # (TB, N)
    mmax = jnp.max(logits, axis=-1, keepdims=True)
    e = jnp.exp(logits - mmax)
    denom = jnp.sum(e, axis=-1, keepdims=True)
    attn = e * pl.reciprocal(denom, approx=True)                               # (TB, N)

    # Attention pooling: M[b] = sum_n attn[b,n] * MIL[b,n,:].
    mil3 = mil2.reshape(TB, N, A)
    m2 = jnp.sum(mil3 * attn[:, :, None], axis=1)                              # (TB, A)

    # fc2 + ReLU, fc_out + sigmoid (dropout is identity at inference).
    # TODO(synk): training-mode nn.Dropout(p) not implemented (eval -> no-op).
    h = jnp.maximum(jnp.dot(m2, w2_ref[...], preferred_element_type=f32) + b2, 0.0)  # (TB, H)
    logit = jnp.dot(h, wo_ref[...], preferred_element_type=f32) + bo           # (TB, 1)
    out_ref[...] = jax.nn.sigmoid(logit).reshape(1, 1, TB)


def _pick_bag_tile(B, N, D):
    """Bag-tile size targeting ~1024 matmul rows per grid step, bounded by VMEM."""
    TARGET_ROWS = 1024
    TB = max(1, min(B, TARGET_ROWS // max(N, 1)))
    # Double-buffered x-tile VMEM footprint with lane (128) / sublane (8) padding.
    lane = -(-D // 128) * 128
    sub = -(-N // 8) * 8
    budget = 8 * 1024 * 1024
    while TB > 1 and TB * sub * lane * 4 * 2 > budget:
        TB = max(1, TB // 2)
    T = -(-B // TB)
    # Keep >= 2 grid steps for larger batches so the v7x megacore's second
    # TensorCore gets work on the "parallel" grid axis.
    if T == 1 and B >= 16:
        TB = -(-B // 2)
        T = -(-B // TB)
    return TB, T


def deepmil_forward(in_features, params, add_features=None):
    """in_features: (B, input_size, N) -- PyTorch layout. Returns (B, 1, 1)."""
    # TODO(synk): lymph_count=True branch (concat of add_features into M) not
    # implemented; module default is lymph_count=False so add_features is unused.
    del add_features
    B, D, N = in_features.shape
    (w1, b1, wv, bv, wu, bu, wa, ba, w2, b2, wo, bo) = params
    A = w1.shape[1]
    H = w2.shape[1]

    # Fold the PyTorch `in_features.transpose(-1, 1)` into one wrapper-side
    # layout pass (fused with the dtype cast); kernel sees instance-major rows.
    # (bf16 input DMA would halve HBM traffic on v5e/v6e; kept f32 for tolerance.)
    x = jnp.transpose(in_features, (0, 2, 1)).astype(jnp.float32)    # (B, N, D)

    TB, T = _pick_bag_tile(B, N, D)
    B_pad = T * TB
    if B_pad != B:
        # Zero-padded bags give a uniform softmax (no NaNs); sliced off below.
        x = jnp.pad(x, ((0, B_pad - B), (0, 0), (0, 0)))

    # Pack small operands: fused V|U weight, one bias row, SMEM scalars.
    wvu = jnp.concatenate([wv, wu], axis=1)                          # (A, 2D)
    bias_slab = jnp.concatenate([b1, bv, bu, b2], axis=1)            # (1, A+2D+H)
    wa_col = wa.reshape(D, 1)
    wo_col = wo.reshape(H, 1)
    scal = jnp.stack([ba[0, 0], bo[0, 0]]).astype(jnp.float32)       # (2,)

    def const2d(shape):
        # Constant block index -> Pallas DMAs these operands only once.
        return pl.BlockSpec(shape, lambda i: (0, 0))

    out = pl.pallas_call(
        deepmil_kernel,
        out_shape=jax.ShapeDtypeStruct((T, 1, TB), jnp.float32),
        grid=(T,),
        in_specs=[
            pl.BlockSpec((TB, N, D), lambda i: (i, 0, 0)),           # bag tile
            const2d((D, A)),                                         # fc1
            const2d((A, 2 * D)),                                     # attention_V | U
            const2d((D, 1)),                                         # attention_weights
            const2d((A, H)),                                         # fc2
            const2d((H, 1)),                                         # fc_out
            const2d((1, A + 2 * D + H)),                             # packed biases
            pl.BlockSpec(memory_space=pltpu.MemorySpace.SMEM),       # [ba, bo]
        ],
        out_specs=pl.BlockSpec((1, 1, TB), lambda i: (i, 0, 0)),     # lane-dense output
        compiler_params=pltpu.CompilerParams(
            dimension_semantics=("parallel",),
            vmem_limit_bytes=32 * 1024 * 1024),
    )(x, w1, wvu, wa_col, w2, wo_col, bias_slab, scal)

    return out.reshape(B_pad)[:B].reshape(B, 1, 1)


def init_params(key, input_size, attention, neurons):
    """Deterministic synthetic parameters. Weights stored as (in_dim, out_dim)."""
    keys = jax.random.split(key, 12)
    sc = 0.05

    def w(k, shape):
        return (sc * jax.random.normal(k, shape)).astype(jnp.float32)

    w1 = w(keys[0], (input_size, attention));   b1 = w(keys[1], (1, attention))
    wv = w(keys[2], (attention, input_size));   bv = w(keys[3], (1, input_size))
    wu = w(keys[4], (attention, input_size));   bu = w(keys[5], (1, input_size))
    wa = w(keys[6], (1, input_size));           ba = w(keys[7], (1, 1))
    w2 = w(keys[8], (attention, neurons));      b2 = w(keys[9], (1, neurons))
    wo = w(keys[10], (1, neurons));             bo = w(keys[11], (1, 1))
    return (w1, b1, wv, bv, wu, bu, wa, ba, w2, b2, wo, bo)


def reference_forward(in_features, params):
    """Pure-JAX reference mirroring the PyTorch forward (for sanity check)."""
    (w1, b1, wv, bv, wu, bu, wa, ba, w2, b2, wo, bo) = params
    x = jnp.transpose(in_features, (0, 2, 1)).astype(jnp.float32)    # (B, N, D)
    mil = x @ w1 + b1
    v = jnp.tanh(mil @ wv + bv)
    u = jax.nn.sigmoid(mil @ wu + bu)
    logits = (v * u) @ wa.T + ba[0, 0]                               # (B, N, 1)
    a = jax.nn.softmax(jnp.swapaxes(logits, 1, -1), axis=-1)         # (B, 1, N)
    m = a @ mil                                                      # (B, 1, A)
    h = jnp.maximum(m @ w2 + b2, 0.0)
    return jax.nn.sigmoid(h @ wo.T + bo[0, 0])                       # (B, 1, 1)


if __name__ == "__main__":
    input_size, N = 32, 8            # feature dim, instances per bag
    attention, neurons = 16, 8

    key = jax.random.PRNGKey(0)
    k_in, k_in2, k_p = jax.random.split(key, 3)
    params = init_params(k_p, input_size, attention, neurons)

    # Small case: single bag tile, single grid step.
    B = 2
    in_features = jax.random.normal(k_in, (B, input_size, N), dtype=jnp.float32)
    out = jax.block_until_ready(deepmil_forward(in_features, params))
    ref = reference_forward(in_features, params)
    assert out.shape == (B, 1, 1)
    assert jnp.allclose(out, ref, atol=1e-3, rtol=1e-3), float(jnp.max(jnp.abs(out - ref)))

    # Larger case: multi-step grid (parallel axis splittable across TensorCores).
    B2 = 20
    in_features2 = jax.random.normal(k_in2, (B2, input_size, N), dtype=jnp.float32)
    out2 = jax.block_until_ready(deepmil_forward(in_features2, params))
    ref2 = reference_forward(in_features2, params)
    assert out2.shape == (B2, 1, 1)
    assert jnp.allclose(out2, ref2, atol=1e-3, rtol=1e-3), float(jnp.max(jnp.abs(out2 - ref2)))

    print("KERNEL_OK")
</pallas_src>

<mosaic_0001>
module attributes {stable_mosaic.version = 11 : i64} {
  func.func @deepmil_kernel(%arg0: i32, %arg1: memref<2x8x32xf32, #tpu.memory_space<vmem>>, %arg2: memref<32x16xf32, #tpu.memory_space<vmem>>, %arg3: memref<16x64xf32, #tpu.memory_space<vmem>>, %arg4: memref<32x1xf32, #tpu.memory_space<vmem>>, %arg5: memref<16x8xf32, #tpu.memory_space<vmem>>, %arg6: memref<8x1xf32, #tpu.memory_space<vmem>>, %arg7: memref<1x88xf32, #tpu.memory_space<vmem>>, %arg8: memref<2xf32, #tpu.memory_space<smem>>, %arg9: memref<1x1x2xf32, #tpu.memory_space<vmem>>) attributes {dimension_semantics = [#tpu.dimension_semantics<parallel>], iteration_bounds = array<i64: 1>, scalar_prefetch = 0 : i64, scratch_operands = 0 : i64, tpu.core_type = #tpu.core_type<tc>, window_params = [{transform_indices = @transform_0, window_bounds = array<i64: 2, 8, 32>}, {pipeline_mode = #tpu.pipeline_mode<synchronous>, transform_indices = @transform_1, window_bounds = array<i64: 32, 16>}, {pipeline_mode = #tpu.pipeline_mode<synchronous>, transform_indices = @transform_2, window_bounds = array<i64: 16, 64>}, {pipeline_mode = #tpu.pipeline_mode<synchronous>, transform_indices = @transform_3, window_bounds = array<i64: 32, 1>}, {pipeline_mode = #tpu.pipeline_mode<synchronous>, transform_indices = @transform_4, window_bounds = array<i64: 16, 8>}, {pipeline_mode = #tpu.pipeline_mode<synchronous>, transform_indices = @transform_5, window_bounds = array<i64: 8, 1>}, {pipeline_mode = #tpu.pipeline_mode<synchronous>, transform_indices = @transform_6, window_bounds = array<i64: 1, 88>}, {transform_indices = @transform_7, window_bounds = array<i64: 2>}, {transform_indices = @transform_8, window_bounds = array<i64: 1, 1, 2>}]} {
    %c0 = arith.constant 0 : index
    %c0_0 = arith.constant 0 : index
    %0 = vector.load %arg7[%c0, %c0_0] : memref<1x88xf32, #tpu.memory_space<vmem>>, vector<1x88xf32>
    %1 = vector.extract_strided_slice %0 {offsets = [0, 0], sizes = [1, 16], strides = [1, 1]} : vector<1x88xf32> to vector<1x16xf32>
    %2 = vector.extract_strided_slice %0 {offsets = [0, 16], sizes = [1, 64], strides = [1, 1]} : vector<1x88xf32> to vector<1x64xf32>
    %3 = vector.extract_strided_slice %0 {offsets = [0, 80], sizes = [1, 8], strides = [1, 1]} : vector<1x88xf32> to vector<1x8xf32>
    %c0_1 = arith.constant 0 : index
    %4 = memref.load %arg8[%c0_1] : memref<2xf32, #tpu.memory_space<smem>>
    %c1 = arith.constant 1 : index
    %5 = memref.load %arg8[%c1] : memref<2xf32, #tpu.memory_space<smem>>
    %c0_2 = arith.constant 0 : index
    %c0_3 = arith.constant 0 : index
    %c0_4 = arith.constant 0 : index
    %6 = vector.load %arg1[%c0_2, %c0_3, %c0_4] : memref<2x8x32xf32, #tpu.memory_space<vmem>>, vector<2x8x32xf32>
    %7 = vector.shape_cast %6 : vector<2x8x32xf32> to vector<16x32xf32>
    %c0_5 = arith.constant 0 : index
    %c0_6 = arith.constant 0 : index
    %8 = vector.load %arg2[%c0_5, %c0_6] : memref<32x16xf32, #tpu.memory_space<vmem>>, vector<32x16xf32>
    %cst = arith.constant dense<0.000000e+00> : vector<16x16xf32>
    %9 = tpu.matmul %7, %8, %cst {dimension_numbers = #tpu.dot_dimension_numbers<[1], [0], [0], [1], [0, 0, 1, 1], [], []>} : vector<16x32xf32>, vector<32x16xf32>, vector<16x16xf32> -> vector<16x16xf32>
    %10 = vector.broadcast %1 : vector<1x16xf32> to vector<16x16xf32>
    %11 = arith.addf %9, %10 : vector<16x16xf32>
    %c0_7 = arith.constant 0 : index
    %c0_8 = arith.constant 0 : index
    %12 = vector.load %arg3[%c0_7, %c0_8] : memref<16x64xf32, #tpu.memory_space<vmem>>, vector<16x64xf32>
    %cst_9 = arith.constant dense<0.000000e+00> : vector<16x64xf32>
    %13 = tpu.matmul %11, %12, %cst_9 {dimension_numbers = #tpu.dot_dimension_numbers<[1], [0], [0], [1], [0, 0, 1, 1], [], []>} : vector<16x16xf32>, vector<16x64xf32>, vector<16x64xf32> -> vector<16x64xf32>
    %14 = vector.broadcast %2 : vector<1x64xf32> to vector<16x64xf32>
    %15 = arith.addf %13, %14 : vector<16x64xf32>
    %16 = vector.extract_strided_slice %15 {offsets = [0, 0], sizes = [16, 32], strides = [1, 1]} : vector<16x64xf32> to vector<16x32xf32>
    %17 = math.tanh %16 : vector<16x32xf32>
    %18 = vector.extract_strided_slice %15 {offsets = [0, 32], sizes = [16, 32], strides = [1, 1]} : vector<16x64xf32> to vector<16x32xf32>
    %19 = arith.negf %18 : vector<16x32xf32>
    %20 = math.exp %19 : vector<16x32xf32>
    %cst_10 = arith.constant 1.000000e+00 : f32
    %21 = vector.broadcast %cst_10 : f32 to vector<16x32xf32>
    %22 = arith.addf %21, %20 : vector<16x32xf32>
    %23 = arith.divf %21, %22 : vector<16x32xf32>
    %24 = arith.mulf %17, %23 : vector<16x32xf32>
    %c0_11 = arith.constant 0 : index
    %c0_12 = arith.constant 0 : index
    %25 = vector.load %arg4[%c0_11, %c0_12] : memref<32x1xf32, #tpu.memory_space<vmem>>, vector<32x1xf32>
    %cst_13 = arith.constant dense<0.000000e+00> : vector<16x1xf32>
    %26 = tpu.matmul %24, %25, %cst_13 {dimension_numbers = #tpu.dot_dimension_numbers<[1], [0], [0], [1], [0, 0, 1, 1], [], []>} : vector<16x32xf32>, vector<32x1xf32>, vector<16x1xf32> -> vector<16x1xf32>
    %27 = vector.broadcast %4 : f32 to vector<16x1xf32>
    %28 = arith.addf %26, %27 : vector<16x1xf32>
    %29 = vector.shape_cast %28 : vector<16x1xf32> to vector<2x8xf32>
    %cst_14 = arith.constant dense<0xFF800000> : vector<2xf32>
    %30 = vector.multi_reduction <maximumf>, %29, %cst_14 [1] : vector<2x8xf32> to vector<2xf32>
    %31 = vector.shape_cast %30 : vector<2xf32> to vector<2x1xf32>
    %32 = vector.broadcast %31 : vector<2x1xf32> to vector<2x8xf32>
    %33 = arith.subf %29, %32 : vector<2x8xf32>
    %34 = math.exp %33 : vector<2x8xf32>
    %cst_15 = arith.constant dense<0.000000e+00> : vector<2xf32>
    %35 = vector.multi_reduction <add>, %34, %cst_15 [1] : vector<2x8xf32> to vector<2xf32>
    %36 = vector.shape_cast %35 : vector<2xf32> to vector<2x1xf32>
    %37 = tpu.reciprocal %36 {approx = true} : vector<2x1xf32> -> vector<2x1xf32>
    %38 = vector.broadcast %37 : vector<2x1xf32> to vector<2x8xf32>
    %39 = arith.mulf %34, %38 : vector<2x8xf32>
    %40 = vector.shape_cast %11 : vector<16x16xf32> to vector<2x8x16xf32>
    %41 = vector.shape_cast %39 : vector<2x8xf32> to vector<2x8x1xf32>
    %42 = vector.broadcast %41 : vector<2x8x1xf32> to vector<2x8x16xf32>
    %43 = arith.mulf %40, %42 : vector<2x8x16xf32>
    %cst_16 = arith.constant dense<0.000000e+00> : vector<2x16xf32>
    %44 = vector.multi_reduction <add>, %43, %cst_16 [1] : vector<2x8x16xf32> to vector<2x16xf32>
    %c0_17 = arith.constant 0 : index
    %c0_18 = arith.constant 0 : index
    %45 = vector.load %arg5[%c0_17, %c0_18] : memref<16x8xf32, #tpu.memory_space<vmem>>, vector<16x8xf32>
    %cst_19 = arith.constant dense<0.000000e+00> : vector<2x8xf32>
    %46 = tpu.matmul %44, %45, %cst_19 {dimension_numbers = #tpu.dot_dimension_numbers<[1], [0], [0], [1], [0, 0, 1, 1], [], []>} : vector<2x16xf32>, vector<16x8xf32>, vector<2x8xf32> -> vector<2x8xf32>
    %47 = vector.broadcast %3 : vector<1x8xf32> to vector<2x8xf32>
    %48 = arith.addf %46, %47 : vector<2x8xf32>
    %cst_20 = arith.constant 0.000000e+00 : f32
    %49 = vector.broadcast %cst_20 : f32 to vector<2x8xf32>
    %50 = arith.maximumf %48, %49 : vector<2x8xf32>
    %c0_21 = arith.constant 0 : index
    %c0_22 = arith.constant 0 : index
    %51 = vector.load %arg6[%c0_21, %c0_22] : memref<8x1xf32, #tpu.memory_space<vmem>>, vector<8x1xf32>
    %cst_23 = arith.constant dense<0.000000e+00> : vector<2x1xf32>
    %52 = tpu.matmul %50, %51, %cst_23 {dimension_numbers = #tpu.dot_dimension_numbers<[1], [0], [0], [1], [0, 0, 1, 1], [], []>} : vector<2x8xf32>, vector<8x1xf32>, vector<2x1xf32> -> vector<2x1xf32>
    %53 = vector.broadcast %5 : f32 to vector<2x1xf32>
    %54 = arith.addf %52, %53 : vector<2x1xf32>
    %55 = arith.negf %54 : vector<2x1xf32>
    %56 = math.exp %55 : vector<2x1xf32>
    %cst_24 = arith.constant 1.000000e+00 : f32
    %57 = vector.broadcast %cst_24 : f32 to vector<2x1xf32>
    %58 = arith.addf %57, %56 : vector<2x1xf32>
    %59 = arith.divf %57, %58 : vector<2x1xf32>
    %60 = vector.shape_cast %59 : vector<2x1xf32> to vector<1x1x2xf32>
    %c0_25 = arith.constant 0 : index
    %c0_26 = arith.constant 0 : index
    %c0_27 = arith.constant 0 : index
    %61 = vector.load %arg9[%c0_25, %c0_26, %c0_27] : memref<1x1x2xf32, #tpu.memory_space<vmem>>, vector<1x1x2xf32>
    tpu.vector_store %arg9[%c0_25, %c0_26, %c0_27], %60 {strides = array<i32>} : memref<1x1x2xf32, #tpu.memory_space<vmem>>, vector<1x1x2xf32>,
    return
  }
  func.func @transform_0(%arg0: i32) -> (i32, i32, i32) {
    %c0_i32 = arith.constant 0 : i32
    %c0_i32_0 = arith.constant 0 : i32
    %c0_i32_1 = arith.constant 0 : i32
    return %arg0, %c0_i32, %c0_i32_0 : i32, i32, i32
  }
  func.func @transform_1(%arg0: i32) -> (i32, i32) {
    %c0_i32 = arith.constant 0 : i32
    %c0_i32_0 = arith.constant 0 : i32
    %c0_i32_1 = arith.constant 0 : i32
    return %c0_i32, %c0_i32_0 : i32, i32
  }
  func.func @transform_2(%arg0: i32) -> (i32, i32) {
    %c0_i32 = arith.constant 0 : i32
    %c0_i32_0 = arith.constant 0 : i32
    %c0_i32_1 = arith.constant 0 : i32
    return %c0_i32, %c0_i32_0 : i32, i32
  }
  func.func @transform_3(%arg0: i32) -> (i32, i32) {
    %c0_i32 = arith.constant 0 : i32
    %c0_i32_0 = arith.constant 0 : i32
    %c0_i32_1 = arith.constant 0 : i32
    return %c0_i32, %c0_i32_0 : i32, i32
  }
  func.func @transform_4(%arg0: i32) -> (i32, i32) {
    %c0_i32 = arith.constant 0 : i32
    %c0_i32_0 = arith.constant 0 : i32
    %c0_i32_1 = arith.constant 0 : i32
    return %c0_i32, %c0_i32_0 : i32, i32
  }
  func.func @transform_5(%arg0: i32) -> (i32, i32) {
    %c0_i32 = arith.constant 0 : i32
    %c0_i32_0 = arith.constant 0 : i32
    %c0_i32_1 = arith.constant 0 : i32
    return %c0_i32, %c0_i32_0 : i32, i32
  }
  func.func @transform_6(%arg0: i32) -> (i32, i32) {
    %c0_i32 = arith.constant 0 : i32
    %c0_i32_0 = arith.constant 0 : i32
    %c0_i32_1 = arith.constant 0 : i32
    return %c0_i32, %c0_i32_0 : i32, i32
  }
  func.func @transform_7(%arg0: i32) -> i32 {
    %c0_i32 = arith.constant 0 : i32
    %c0_i32_0 = arith.constant 0 : i32
    return %c0_i32 : i32
  }
  func.func @transform_8(%arg0: i32) -> (i32, i32, i32) {
    %c0_i32 = arith.constant 0 : i32
    %c0_i32_0 = arith.constant 0 : i32
    %c0_i32_1 = arith.constant 0 : i32
    return %arg0, %c0_i32, %c0_i32_0 : i32, i32, i32
  }
}

</mosaic_0001>

<llo_original>
// kernel: tpu_custom_call.1
$region0: #{tpu_custom_call.1}
  #allocation0 [shape = 'u32[]', space=smem, size = 0x4, offset = 0x4, fixed_abs, tag = 'smem constant byte address 0x4 - core index']
  #allocation1 [shape = 'u32[144,128]{1,0:T(1,128)}', space=vmem, size = 0x12000, scoped, tag = 'internal scratch']
  %s0 = inlined_call_operand.vmem [shape: f32[2,8,32], index: 0, kind: input, shape index: {}]
  %s1 = inlined_call_operand.vmem [shape: f32[32,16], index: 1, kind: input, shape index: {}]
  %s2 = inlined_call_operand.vmem [shape: f32[16,64], index: 2, kind: input, shape index: {}]
  %s3 = inlined_call_operand.vmem [shape: f32[32,1], index: 3, kind: input, shape index: {}]
  %s4 = inlined_call_operand.vmem [shape: f32[16,8], index: 4, kind: input, shape index: {}]
  %s5 = inlined_call_operand.vmem [shape: f32[8,1], index: 5, kind: input, shape index: {}]
  %s6 = inlined_call_operand.vmem [shape: f32[1,88], index: 6, kind: input, shape index: {}]
  %s7 = inlined_call_operand.vmem [shape: f32[2], index: 7, kind: input, shape index: {}]
  %s8 = inlined_call_operand.hbm [shape: f32[1,1,2], index: 8, kind: output, shape index: {}]
  %s9 = sld [smem:[#allocation0]]
  $region46: #{tpu_custom_call.1} parent=0
    _
  %s11 = ssub.s32 1, %s9
  %s12 = scalar_select 0, %s11, %s9
  $region1: #{tpu_custom_call.1} parent=0
    #allocation2 [shape = 'u8[512]{0}', space=smem, size = 0x200, scoped, tag = 'input window, operand 7, single buffered']
    #allocation3 [shape = 's32[1]{0}', space=sflag, size = 0x4, scoped, tag = 'scoped memory for tpu_custom_call.1']
    #allocation4 [shape = 's32[1]{0}', space=sflag, size = 0x4, scoped, tag = 'scoped memory for tpu_custom_call.1']
    #allocation5 [shape = 'u8[512]{0}', space=vmem, size = 0x400, scoped, tag = 'output window, operand 0, single buffered']
    %13 = vsyncpa [#allocation4], 0
    %14 = vsyncpa [#allocation3], 0
    // Predicated region
    $region2: #{tpu_custom_call.1} parent=1 // pred_check
      _
    $region3: #{tpu_custom_call.1} parent=1 // pred_check_branch
      %16 = sbr.rel (0) target = $region5
    $region4: #{tpu_custom_call.1} parent=1 // pred_region
      _
    $region5: #{tpu_custom_call.1} parent=1 // pred_fallthru
      _
    // Predicated region
    $region6: #{tpu_custom_call.1} parent=1 // pred_check
      _
    $region7: #{tpu_custom_call.1} parent=1 // pred_check_branch
      %18 = sbr.rel (0) target = $region9
    $region8: #{tpu_custom_call.1} parent=1 // pred_region
      _
    $region9: #{tpu_custom_call.1} parent=1 // pred_fallthru
      _
    // Predicated region
    $region10: #{tpu_custom_call.1} parent=1 // pred_check
      _
    $region11: #{tpu_custom_call.1} parent=1 // pred_check_branch
      %20 = sbr.rel (0) target = $region13
    $region12: #{tpu_custom_call.1} parent=1 // pred_region
      _
    $region13: #{tpu_custom_call.1} parent=1 // pred_fallthru
      _
    // Predicated region
    $region14: #{tpu_custom_call.1} parent=1 // pred_check
      _
    $region15: #{tpu_custom_call.1} parent=1 // pred_check_branch
      %22 = sbr.rel (0) target = $region17
    $region16: #{tpu_custom_call.1} parent=1 // pred_region
      _
    $region17: #{tpu_custom_call.1} parent=1 // pred_fallthru
      _
    // Predicated region
    $region18: #{tpu_custom_call.1} parent=1 // pred_check
      _
    $region19: #{tpu_custom_call.1} parent=1 // pred_check_branch
      %24 = sbr.rel (0) target = $region21
    $region20: #{tpu_custom_call.1} parent=1 // pred_region
      _
    $region21: #{tpu_custom_call.1} parent=1 // pred_fallthru
      _
    // Predicated region
    $region22: #{tpu_custom_call.1} parent=1 // pred_check
      _
    $region23: #{tpu_custom_call.1} parent=1 // pred_check_branch
      %26 = sbr.rel (0) target = $region25
    $region24: #{tpu_custom_call.1} parent=1 // pred_region
      _
    $region25: #{tpu_custom_call.1} parent=1 // pred_fallthru
      _
    // Predicated region
    $region26: #{tpu_custom_call.1} parent=1 // pred_check
      _
    $region27: #{tpu_custom_call.1} parent=1 // pred_check_branch
      %28 = sbr.rel (0) target = $region29
    $region28: #{tpu_custom_call.1} parent=1 // pred_region
      _
    $region29: #{tpu_custom_call.1} parent=1 // pred_fallthru
      _
    // Predicated region
    $region30: #{tpu_custom_call.1} parent=1 // pred_check
      _
    $region31: #{tpu_custom_call.1} parent=1 // pred_check_branch
      %30 = sbr.rel (0) target = $region33
    $region32: #{tpu_custom_call.1} parent=1 // pred_region
      %s32 = ssub.s32 16, 16
      %33 = vsyncadd [#allocation4], %s32
      %s35 = sshll.u32 %s7, 4
      %s36 = int_to_ptr.vmem [resolvable:$true] %s35
      %38 = dma.vmem_to_smem %s36, 16, [#allocation2], [#allocation4]
    $region33: #{tpu_custom_call.1} parent=1 // pred_fallthru
      _
    // Predicated region
    $region34: #{tpu_custom_call.1} parent=1 // pred_check
      _
    $region35: #{tpu_custom_call.1} parent=1 // pred_check_branch
      %40 = sbr.rel (0) target = $region37
    $region36: #{tpu_custom_call.1} parent=1 // pred_region
      %41 = dma.done [#allocation4], 16
    $region37: #{tpu_custom_call.1} parent=1 // pred_fallthru
      _
    %42 = sfence
    %v43 = vld [vmem:[%s6] sm:$0x1]
    %s44 = sld [smem:[#allocation2]]
    %s45 = sld [smem:[#allocation2 + $0x1]]
    %v46 = vld [vmem:[%s0] sm:$0xff]
    %v47 = vld [vmem:[%s0 + $0x8] sm:$0xff]
    %v48 = vld [vmem:[%s1] sm:$0xff]
    %v49 = vld [vmem:[%s1 + $0x8] sm:$0xff]
    %v50 = vld [vmem:[%s1 + $0x10] sm:$0xff]
    %v51 = vld [vmem:[%s1 + $0x18] sm:$0xff]
    %v53 = vlaneseq
    %v54 = vshrl.u32 %v53, 7
    %v55 = vsub.s32 0, %v54
    %v56 = vrot.slane %v43, %v55
    %vm58 = vcmask 261120
    %v60 = vsel %vm58, %v46, 0
    %v63 = vsel %vm58, %v47, 0
    %65 = vmatprep.subr.mxu0 0.0
    %66 = vmatpush1.msra.mxu0 %v48
    %67 = vmatprep.subr.mxu0 0.0
    %68 = vmatpush1.msra.mxu0 %v49
    %69 = vmatprep.subr.mxu0 0.0
    %70 = vmatpush1.msra.mxu0 %v50
    %71 = vmatprep.subr.mxu0 0.0
    %72 = vmatpush1.msra.mxu0 %v51
    %73 = vmatprep.subr.mxu0 0.0
    %74 = vmatpush1.msra.mxu0 0.0
    %75 = vmatprep.subr.mxu0 0.0
    %76 = vmatpush1.msra.mxu0 0.0
    %77 = vmatprep.subr.mxu0 0.0
    %78 = vmatpush1.msra.mxu0 0.0
    %79 = vmatprep.subr.mxu0 0.0
    %80 = vmatpush1.msra.mxu0 0.0
    %81 = vmatprep.subr.mxu0 0.0
    %82 = vmatpush1.msra.mxu0 0.0
    %83 = vmatprep.subr.mxu0 0.0
    %84 = vmatpush1.msra.mxu0 0.0
    %85 = vmatprep.subr.mxu0 0.0
    %86 = vmatpush1.msra.mxu0 0.0
    %87 = vmatprep.subr.mxu0 0.0
    %88 = vmatpush1.msra.mxu0 0.0
    %89 = vmatprep.subr.mxu0 0.0
    %90 = vmatpush1.msra.mxu0 0.0
    %91 = vmatprep.subr.mxu0 0.0
    %92 = vmatpush1.msra.mxu0 0.0
    %93 = vmatprep.subr.mxu0 0.0
    %94 = vmatpush1.msra.mxu0 0.0
    %95 = vmatprep.subr.mxu0 0.0
    %96 = vmatpush1.msra.mxu0 0.0
    %97 = vmatprep.subr.mxu0 0.0
    %98 = vmatpush1.msra.mxu0 0.0
    %99 = vmatprep.subr.mxu0 0.0
    %100 = vmatpush1.msra.mxu0 0.0
    %101 = vmatprep.subr.mxu0 0.0
    %102 = vmatpush1.msra.mxu0 0.0
    %103 = vmatprep.subr.mxu0 0.0
    %104 = vmatpush1.msra.mxu0 0.0
    %105 = vmatprep.subr.mxu0 0.0
    %106 = vmatpush1.msra.mxu0 0.0
    %107 = vmatprep.subr.mxu0 0.0
    %108 = vmatpush1.msra.mxu0 0.0
    %109 = vmatprep.subr.mxu0 0.0
    %110 = vmatpush1.msra.mxu0 0.0
    %111 = vmatprep.subr.mxu0 0.0
    %112 = vmatpush1.msra.mxu0 0.0
    %113 = vmatprep.subr.mxu0 0.0
    %114 = vmatpush1.msra.mxu0 0.0
    %115 = vmatprep.subr.mxu0 0.0
    %116 = vmatpush1.msra.mxu0 0.0
    %117 = vmatprep.subr.mxu0 0.0
    %118 = vmatpush1.msra.mxu0 0.0
    %119 = vmatprep.subr.mxu0 0.0
    %120 = vmatpush1.msra.mxu0 0.0
    %121 = vmatprep.subr.mxu0 0.0
    %122 = vmatpush1.msra.mxu0 0.0
    %123 = vmatprep.subr.mxu0 0.0
    %124 = vmatpush1.msra.mxu0 0.0
    %125 = vmatprep.subr.mxu0 0.0
    %126 = vmatpush1.msra.mxu0 0.0
    %127 = vmatprep.subr.mxu0 0.0
    %128 = vmatpush1.msra.mxu0 0.0
    %129 = vmatprep.mubr.f32.mxu0 0.0
    %130 = vmatmul.mubr.f32.gmra.mrb[0].mxu0 %v60
    %v131 = vpop.f32.mrb[0].mxu0
    %v132 = vadd.f32 %v56, %v131
    %v133 = vpop.f32.mrb[0].mxu0
    %134 = vmatprep.mubr.f32.mxu0 0.0
    %135 = vmatmul.mubr.f32.gmra.mrb[0].mxu0 %v63
    %v136 = vpop.f32.mrb[0].mxu0
    %v137 = vadd.f32 %v56, %v136
    %v138 = vpop.f32.mrb[0].mxu0
    %139 = vdwg.mxu0
    %v140 = vld [vmem:[%s2] sm:$0xff]
    %v141 = vld [vmem:[%s2 + $0x8] sm:$0xff]
    %142 = vrot.lane.b32.xlu0 %v56, 112
    %v143 = vpop.permute.xlu0 %142
    %vm145 = vcmask 130048
    %v147 = vsel %vm145, %v132, 0
    %v150 = vsel %vm145, %v137, 0
    %152 = vmatprep.subr.mxu0 0.0
    %153 = vmatpush1.msra.mxu0 %v140
    %154 = vmatprep.subr.mxu0 0.0
    %155 = vmatpush1.msra.mxu0 %v141
    %156 = vmatprep.subr.mxu0 0.0
    %157 = vmatpush1.msra.mxu0 0.0
    %158 = vmatprep.subr.mxu0 0.0
    %159 = vmatpush1.msra.mxu0 0.0
    %160 = vmatprep.subr.mxu0 0.0
    %161 = vmatpush1.msra.mxu0 0.0
    %162 = vmatprep.subr.mxu0 0.0
    %163 = vmatpush1.msra.mxu0 0.0
    %164 = vmatprep.subr.mxu0 0.0
    %165 = vmatpush1.msra.mxu0 0.0
    %166 = vmatprep.subr.mxu0 0.0
    %167 = vmatpush1.msra.mxu0 0.0
    %168 = vmatprep.subr.mxu0 0.0
    %169 = vmatpush1.msra.mxu0 0.0
    %170 = vmatprep.subr.mxu0 0.0
    %171 = vmatpush1.msra.mxu0 0.0
    %172 = vmatprep.subr.mxu0 0.0
    %173 = vmatpush1.msra.mxu0 0.0
    %174 = vmatprep.subr.mxu0 0.0
    %175 = vmatpush1.msra.mxu0 0.0
    %176 = vmatprep.subr.mxu0 0.0
    %177 = vmatpush1.msra.mxu0 0.0
    %178 = vmatprep.subr.mxu0 0.0
    %179 = vmatpush1.msra.mxu0 0.0
    %180 = vmatprep.subr.mxu0 0.0
    %181 = vmatpush1.msra.mxu0 0.0
    %182 = vmatprep.subr.mxu0 0.0
    %183 = vmatpush1.msra.mxu0 0.0
    %184 = vmatprep.subr.mxu0 0.0
    %185 = vmatpush1.msra.mxu0 0.0
    %186 = vmatprep.subr.mxu0 0.0
    %187 = vmatpush1.msra.mxu0 0.0
    %188 = vmatprep.subr.mxu0 0.0
    %189 = vmatpush1.msra.mxu0 0.0
    %190 = vmatprep.subr.mxu0 0.0
    %191 = vmatpush1.msra.mxu0 0.0
    %192 = vmatprep.subr.mxu0 0.0
    %193 = vmatpush1.msra.mxu0 0.0
    %194 = vmatprep.subr.mxu0 0.0
    %195 = vmatpush1.msra.mxu0 0.0
    %196 = vmatprep.subr.mxu0 0.0
    %197 = vmatpush1.msra.mxu0 0.0
    %198 = vmatprep.subr.mxu0 0.0
    %199 = vmatpush1.msra.mxu0 0.0
    %200 = vmatprep.subr.mxu0 0.0
    %201 = vmatpush1.msra.mxu0 0.0
    %202 = vmatprep.subr.mxu0 0.0
    %203 = vmatpush1.msra.mxu0 0.0
    %204 = vmatprep.subr.mxu0 0.0
    %205 = vmatpush1.msra.mxu0 0.0
    %206 = vmatprep.subr.mxu0 0.0
    %207 = vmatpush1.msra.mxu0 0.0
    %208 = vmatprep.subr.mxu0 0.0
    %209 = vmatpush1.msra.mxu0 0.0
    %210 = vmatprep.subr.mxu0 0.0
    %211 = vmatpush1.msra.mxu0 0.0
    %212 = vmatprep.subr.mxu0 0.0
    %213 = vmatpush1.msra.mxu0 0.0
    %214 = vmatprep.subr.mxu0 0.0
    %215 = vmatpush1.msra.mxu0 0.0
    %216 = vmatprep.mubr.f32.mxu0 0.0
    %217 = vmatmul.mubr.f32.gmra.mrb[0].mxu0 %v147
    %v218 = vpop.f32.mrb[0].mxu0
    %v219 = vadd.f32 %v143, %v218
    %v220 = vpop.f32.mrb[0].mxu0
    %221 = vmatprep.mubr.f32.mxu0 0.0
    %222 = vmatmul.mubr.f32.gmra.mrb[0].mxu0 %v150
    %v223 = vpop.f32.mrb[0].mxu0
    %v224 = vadd.f32 %v143, %v223
    %v225 = vpop.f32.mrb[0].mxu0
    %226 = vdwg.mxu0
    %v227 = vtanh.pop %v219
    %v228 = vtanh.pop %v224
    %v229 = vxor.u32 %v219, 2147483648
    %v230 = vxor.u32 %v224, 2147483648
    %v231 = vmul.f32 %v229, 1.442695
    %v232 = vpow.pop %v231
    %v233 = vmul.f32 %v230, 1.442695
    %v234 = vpow.pop %v233
    %v235 = vadd.f32 %v232, 1.0
    %v236 = vadd.f32 %v234, 1.0
    %v237 = vrcp.pop %v235
    %v238 = vmul.f32 1.0, %v237
    %v239 = vrcp.pop %v236
    %v240 = vmul.f32 1.0, %v239
    %243 = vrot.lane.b32.xlu0 %v238, 96
    %v244 = vpop.permute.xlu0 %243
    %245 = vrot.lane.b32.xlu0 %v240, 96
    %v246 = vpop.permute.xlu0 %245
    %v249 = vmul.f32 %v227, %v244
    %v250 = vmul.f32 %v228, %v246
    %v251 = vld [vmem:[%s3] sm:$0xff]
    %v252 = vld [vmem:[%s3 + $0x8] sm:$0xff]
    %v253 = vld [vmem:[%s3 + $0x10] sm:$0xff]
    %v254 = vld [vmem:[%s3 + $0x18] sm:$0xff]
    %v255 = vstv %s44
    %v257 = vsel %vm58, %v249, 0
    %v260 = vsel %vm58, %v250, 0
    %262 = vmatprep.subr.mxu0 0.0
    %263 = vmatpush1.msra.mxu0 %v251
    %264 = vmatprep.subr.mxu0 0.0
    %265 = vmatpush1.msra.mxu0 %v252
    %266 = vmatprep.subr.mxu0 0.0
    %267 = vmatpush1.msra.mxu0 %v253
    %268 = vmatprep.subr.mxu0 0.0
    %269 = vmatpush1.msra.mxu0 %v254
    %270 = vmatprep.subr.mxu0 0.0
    %271 = vmatpush1.msra.mxu0 0.0
    %272 = vmatprep.subr.mxu0 0.0
    %273 = vmatpush1.msra.mxu0 0.0
    %274 = vmatprep.subr.mxu0 0.0
    %275 = vmatpush1.msra.mxu0 0.0
    %276 = vmatprep.subr.mxu0 0.0
    %277 = vmatpush1.msra.mxu0 0.0
    %278 = vmatprep.subr.mxu0 0.0
    %279 = vmatpush1.msra.mxu0 0.0
    %280 = vmatprep.subr.mxu0 0.0
    %281 = vmatpush1.msra.mxu0 0.0
    %282 = vmatprep.subr.mxu0 0.0
    %283 = vmatpush1.msra.mxu0 0.0
    %284 = vmatprep.subr.mxu0 0.0
    %285 = vmatpush1.msra.mxu0 0.0
    %286 = vmatprep.subr.mxu0 0.0
    %287 = vmatpush1.msra.mxu0 0.0
    %288 = vmatprep.subr.mxu0 0.0
    %289 = vmatpush1.msra.mxu0 0.0
    %290 = vmatprep.subr.mxu0 0.0
    %291 = vmatpush1.msra.mxu0 0.0
    %292 = vmatprep.subr.mxu0 0.0
    %293 = vmatpush1.msra.mxu0 0.0
    %294 = vmatprep.subr.mxu0 0.0
    %295 = vmatpush1.msra.mxu0 0.0
    %296 = vmatprep.subr.mxu0 0.0
    %297 = vmatpush1.msra.mxu0 0.0
    %298 = vmatprep.subr.mxu0 0.0
    %299 = vmatpush1.msra.mxu0 0.0
    %300 = vmatprep.subr.mxu0 0.0
    %301 = vmatpush1.msra.mxu0 0.0
    %302 = vmatprep.subr.mxu0 0.0
    %303 = vmatpush1.msra.mxu0 0.0
    %304 = vmatprep.subr.mxu0 0.0
    %305 = vmatpush1.msra.mxu0 0.0
    %306 = vmatprep.subr.mxu0 0.0
    %307 = vmatpush1.msra.mxu0 0.0
    %308 = vmatprep.subr.mxu0 0.0
    %309 = vmatpush1.msra.mxu0 0.0
    %310 = vmatprep.subr.mxu0 0.0
    %311 = vmatpush1.msra.mxu0 0.0
    %312 = vmatprep.subr.mxu0 0.0
    %313 = vmatpush1.msra.mxu0 0.0
    %314 = vmatprep.subr.mxu0 0.0
    %315 = vmatpush1.msra.mxu0 0.0
    %316 = vmatprep.subr.mxu0 0.0
    %317 = vmatpush1.msra.mxu0 0.0
    %318 = vmatprep.subr.mxu0 0.0
    %319 = vmatpush1.msra.mxu0 0.0
    %320 = vmatprep.subr.mxu0 0.0
    %321 = vmatpush1.msra.mxu0 0.0
    %322 = vmatprep.subr.mxu0 0.0
    %323 = vmatpush1.msra.mxu0 0.0
    %324 = vmatprep.subr.mxu0 0.0
    %325 = vmatpush1.msra.mxu0 0.0
    %326 = vmatprep.mubr.f32.mxu0 0.0
    %327 = vmatmul.mubr.f32.gmra.mrb[0].mxu0 %v257
    %v328 = vpop.f32.mrb[0].mxu0
    %v329 = vadd.f32 %v255, %v328
    %v330 = vpop.f32.mrb[0].mxu0
    %331 = vmatprep.mubr.f32.mxu0 0.0
    %332 = vmatmul.mubr.f32.gmra.mrb[0].mxu0 %v260
    %v333 = vpop.f32.mrb[0].mxu0
    %v334 = vadd.f32 %v255, %v333
    %v335 = vpop.f32.mrb[0].mxu0
    %336 = vdwg.mxu0
    %339 = vset.pattern.permute.xlu0 0
    %340 = vperm.xlu0 %339, %v329
    %v341 = vpop.permute.xlu0 %340
    %342 = vset.pattern.permute.xlu0 0
    %343 = vperm.xlu0 %342, %v334
    %v344 = vpop.permute.xlu0 %343
    %v345 = vlaneseq
    %v346 = vand.u32 %v345, 127
    %v347 = vlaneseq
    %v348 = vshrl.u32 %v347, 7
    %v349 = vsub.s32 %v346, %v348
    %v350 = vrot.slane %v341, %v349
    %v351 = vlaneseq
    %v352 = vshrl.u32 %v351, 7
    %v353 = vsub.s32 %v346, %v352
    %v354 = vrot.slane %v344, %v353
    %vm355 = vcmask 1041409
    %v356 = vsel %vm355, %v354, %v350
    %vm358 = vcmask 58368
    %v359 = vsel %vm358, %v356, -inf
    %360 = vmax.xlane.f32.xlu0 %v359
    %v361 = vpop.xlane.xlu0 %360
    %v363 = vlaneseq
    %v364 = vshrl.u32 %v363, 7
    %v365 = vsub.s32 0, %v364
    %v366 = vrot.slane %v361, %v365
    %v367 = vlaneseq
    %v368 = vshrl.u32 %v367, 7
    %v369 = vsub.s32 1, %v368
    %v370 = vrot.slane %v361, %v369
    %v373 = vsub.f32 %v329, %v366
    %v374 = vsub.f32 %v334, %v370
    %v375 = vmul.f32 %v373, 1.442695
    %v376 = vpow.pop %v375
    %v377 = vmul.f32 %v374, 1.442695
    %v378 = vpow.pop %v377
    %381 = vset.pattern.permute.xlu0 0
    %382 = vperm.xlu0 %381, %v376
    %v383 = vpop.permute.xlu0 %382
    %384 = vset.pattern.permute.xlu0 0
    %385 = vperm.xlu0 %384, %v378
    %v386 = vpop.permute.xlu0 %385
    %v387 = vlaneseq
    %v388 = vshrl.u32 %v387, 7
    %v389 = vsub.s32 %v346, %v388
    %v390 = vrot.slane %v383, %v389
    %v391 = vlaneseq
    %v392 = vshrl.u32 %v391, 7
    %v393 = vsub.s32 %v346, %v392
    %v394 = vrot.slane %v386, %v393
    %v395 = vsel %vm355, %v394, %v390
    %v397 = vsel %vm358, %v395, 0.0
    %398 = vadd.xlane.f32.xlu0 %v397
    %v399 = vpop.xlane.xlu0 %398
    %v400 = vrcp.pop %v399
    %v402 = vlaneseq
    %v403 = vshrl.u32 %v402, 7
    %v404 = vsub.s32 0, %v403
    %v405 = vrot.slane %v400, %v404
    %v406 = vlaneseq
    %v407 = vshrl.u32 %v406, 7
    %v408 = vsub.s32 1, %v407
    %v409 = vrot.slane %v400, %v408
    %v412 = vmul.f32 %v376, %v405
    %v413 = vmul.f32 %v378, %v409
    %415 = vset.pattern.permute.xlu0 0
    %416 = vperm.xlu0 %415, %v412
    %v417 = vpop.permute.xlu0 %416
    %420 = vset.pattern.permute.xlu0 0
    %421 = vperm.xlu0 %420, %v413
    %v422 = vpop.permute.xlu0 %421
    %v424 = vmul.f32 %v132, %v417
    %v425 = vmul.f32 %v137, %v422
    %v426 = vsel %vm145, %v424, 0.0
    %v427 = vrot.slane %v426, 4
    %v428 = vadd.f32 %v426, %v427
    %v429 = vrot.slane %v428, 2
    %v430 = vadd.f32 %v428, %v429
    %v431 = vrot.slane %v430, 1
    %v432 = vadd.f32 %v430, %v431
    %v433 = vsel %vm145, %v425, 0.0
    %v434 = vrot.slane %v433, 4
    %v435 = vadd.f32 %v433, %v434
    %v436 = vrot.slane %v435, 2
    %v437 = vadd.f32 %v435, %v436
    %v438 = vrot.slane %v437, 1
    %v439 = vadd.f32 %v437, %v438
    %v440 = vld [vmem:[%s4] sm:$0xff]
    %v441 = vld [vmem:[%s4 + $0x8] sm:$0xff]
    %v444 = vsel %vm355, %v439, %v432
    %445 = vrot.lane.b32.xlu0 %v56, 48
    %v446 = vpop.permute.xlu0 %445
    %v448 = vsel %vm145, %v444, 0
    %450 = vmatprep.subr.mxu0 0.0
    %451 = vmatpush1.msra.mxu0 %v440
    %452 = vmatprep.subr.mxu0 0.0
    %453 = vmatpush1.msra.mxu0 %v441
    %454 = vmatprep.subr.mxu0 0.0
    %455 = vmatpush1.msra.mxu0 0.0
    %456 = vmatprep.subr.mxu0 0.0
    %457 = vmatpush1.msra.mxu0 0.0
    %458 = vmatprep.subr.mxu0 0.0
    %459 = vmatpush1.msra.mxu0 0.0
    %460 = vmatprep.subr.mxu0 0.0
    %461 = vmatpush1.msra.mxu0 0.0
    %462 = vmatprep.subr.mxu0 0.0
    %463 = vmatpush1.msra.mxu0 0.0
    %464 = vmatprep.subr.mxu0 0.0
    %465 = vmatpush1.msra.mxu0 0.0
    %466 = vmatprep.subr.mxu0 0.0
    %467 = vmatpush1.msra.mxu0 0.0
    %468 = vmatprep.subr.mxu0 0.0
    %469 = vmatpush1.msra.mxu0 0.0
    %470 = vmatprep.subr.mxu0 0.0
    %471 = vmatpush1.msra.mxu0 0.0
    %472 = vmatprep.subr.mxu0 0.0
    %473 = vmatpush1.msra.mxu0 0.0
    %474 = vmatprep.subr.mxu0 0.0
    %475 = vmatpush1.msra.mxu0 0.0
    %476 = vmatprep.subr.mxu0 0.0
    %477 = vmatpush1.msra.mxu0 0.0
    %478 = vmatprep.subr.mxu0 0.0
    %479 = vmatpush1.msra.mxu0 0.0
    %480 = vmatprep.subr.mxu0 0.0
    %481 = vmatpush1.msra.mxu0 0.0
    %482 = vmatprep.subr.mxu0 0.0
    %483 = vmatpush1.msra.mxu0 0.0
    %484 = vmatprep.subr.mxu0 0.0
    %485 = vmatpush1.msra.mxu0 0.0
    %486 = vmatprep.subr.mxu0 0.0
    %487 = vmatpush1.msra.mxu0 0.0
    %488 = vmatprep.subr.mxu0 0.0
    %489 = vmatpush1.msra.mxu0 0.0
    %490 = vmatprep.subr.mxu0 0.0
    %491 = vmatpush1.msra.mxu0 0.0
    %492 = vmatprep.subr.mxu0 0.0
    %493 = vmatpush1.msra.mxu0 0.0
    %494 = vmatprep.subr.mxu0 0.0
    %495 = vmatpush1.msra.mxu0 0.0
    %496 = vmatprep.subr.mxu0 0.0
    %497 = vmatpush1.msra.mxu0 0.0
    %498 = vmatprep.subr.mxu0 0.0
    %499 = vmatpush1.msra.mxu0 0.0
    %500 = vmatprep.subr.mxu0 0.0
    %501 = vmatpush1.msra.mxu0 0.0
    %502 = vmatprep.subr.mxu0 0.0
    %503 = vmatpush1.msra.mxu0 0.0
    %504 = vmatprep.subr.mxu0 0.0
    %505 = vmatpush1.msra.mxu0 0.0
    %506 = vmatprep.subr.mxu0 0.0
    %507 = vmatpush1.msra.mxu0 0.0
    %508 = vmatprep.subr.mxu0 0.0
    %509 = vmatpush1.msra.mxu0 0.0
    %510 = vmatprep.subr.mxu0 0.0
    %511 = vmatpush1.msra.mxu0 0.0
    %512 = vmatprep.subr.mxu0 0.0
    %513 = vmatpush1.msra.mxu0 0.0
    %514 = vmatprep.mubr.f32.mxu0 0.0
    %515 = vmatmul.mubr.f32.gmra.mrb[0].mxu0 %v448
    %v516 = vpop.f32.mrb[0].mxu0
    %v517 = vadd.f32 %v446, %v516
    %v518 = vpop.f32.mrb[0].mxu0
    %519 = vdwg.mxu0
    %v520 = vmax.f32 %v517, 0.0
    %v521 = vld [vmem:[%s5] sm:$0xff]
    %v522 = vstv %s45
    %vm523 = vcmask 64512
    %v525 = vsel %vm523, %v520, 0
    %527 = vmatprep.subr.mxu0 0.0
    %528 = vmatpush1.msra.mxu0 %v521
    %529 = vmatprep.subr.mxu0 0.0
    %530 = vmatpush1.msra.mxu0 0.0
    %531 = vmatprep.subr.mxu0 0.0
    %532 = vmatpush1.msra.mxu0 0.0
    %533 = vmatprep.subr.mxu0 0.0
    %534 = vmatpush1.msra.mxu0 0.0
    %535 = vmatprep.subr.mxu0 0.0
    %536 = vmatpush1.msra.mxu0 0.0
    %537 = vmatprep.subr.mxu0 0.0
    %538 = vmatpush1.msra.mxu0 0.0
    %539 = vmatprep.subr.mxu0 0.0
    %540 = vmatpush1.msra.mxu0 0.0
    %541 = vmatprep.subr.mxu0 0.0
    %542 = vmatpush1.msra.mxu0 0.0
    %543 = vmatprep.subr.mxu0 0.0
    %544 = vmatpush1.msra.mxu0 0.0
    %545 = vmatprep.subr.mxu0 0.0
    %546 = vmatpush1.msra.mxu0 0.0
    %547 = vmatprep.subr.mxu0 0.0
    %548 = vmatpush1.msra.mxu0 0.0
    %549 = vmatprep.subr.mxu0 0.0
    %550 = vmatpush1.msra.mxu0 0.0
    %551 = vmatprep.subr.mxu0 0.0
    %552 = vmatpush1.msra.mxu0 0.0
    %553 = vmatprep.subr.mxu0 0.0
    %554 = vmatpush1.msra.mxu0 0.0
    %555 = vmatprep.subr.mxu0 0.0
    %556 = vmatpush1.msra.mxu0 0.0
    %557 = vmatprep.subr.mxu0 0.0
    %558 = vmatpush1.msra.mxu0 0.0
    %559 = vmatprep.subr.mxu0 0.0
    %560 = vmatpush1.msra.mxu0 0.0
    %561 = vmatprep.subr.mxu0 0.0
    %562 = vmatpush1.msra.mxu0 0.0
    %563 = vmatprep.subr.mxu0 0.0
    %564 = vmatpush1.msra.mxu0 0.0
    %565 = vmatprep.subr.mxu0 0.0
    %566 = vmatpush1.msra.mxu0 0.0
    %567 = vmatprep.subr.mxu0 0.0
    %568 = vmatpush1.msra.mxu0 0.0
    %569 = vmatprep.subr.mxu0 0.0
    %570 = vmatpush1.msra.mxu0 0.0
    %571 = vmatprep.subr.mxu0 0.0
    %572 = vmatpush1.msra.mxu0 0.0
    %573 = vmatprep.subr.mxu0 0.0
    %574 = vmatpush1.msra.mxu0 0.0
    %575 = vmatprep.subr.mxu0 0.0
    %576 = vmatpush1.msra.mxu0 0.0
    %577 = vmatprep.subr.mxu0 0.0
    %578 = vmatpush1.msra.mxu0 0.0
    %579 = vmatprep.subr.mxu0 0.0
    %580 = vmatpush1.msra.mxu0 0.0
    %581 = vmatprep.subr.mxu0 0.0
    %582 = vmatpush1.msra.mxu0 0.0
    %583 = vmatprep.subr.mxu0 0.0
    %584 = vmatpush1.msra.mxu0 0.0
    %585 = vmatprep.subr.mxu0 0.0
    %586 = vmatpush1.msra.mxu0 0.0
    %587 = vmatprep.subr.mxu0 0.0
    %588 = vmatpush1.msra.mxu0 0.0
    %589 = vmatprep.subr.mxu0 0.0
    %590 = vmatpush1.msra.mxu0 0.0
    %591 = vmatprep.mubr.f32.mxu0 0.0
    %592 = vmatmul.mubr.f32.gmra.mrb[0].mxu0 %v525
    %v593 = vpop.f32.mrb[0].mxu0
    %v594 = vadd.f32 %v522, %v593
    %v595 = vpop.f32.mrb[0].mxu0
    %596 = vdwg.mxu0
    %v597 = vxor.u32 %v594, 2147483648
    %v598 = vmul.f32 %v597, 1.442695
    %v599 = vpow.pop %v598
    %v600 = vadd.f32 %v599, 1.0
    %v601 = vrcp.pop %v600
    %v602 = vmul.f32 1.0, %v601
    %604 = vset.pattern.permute.xlu0 0
    %605 = vperm.xlu0 %604, %v602
    %v606 = vpop.permute.xlu0 %605
    %v607 = vlaneseq
    %v608 = vshrl.u32 %v607, 7
    %v609 = vsub.s32 %v346, %v608
    %v610 = vrot.slane %v606, %v609
    %vm612 = vcmask 8192
    %613 = vst.msk [vmem:[#allocation5] sm:$0x1] %vm612, %v610
    // Predicated region
    $region38: #{tpu_custom_call.1} parent=1 // pred_check
      _
    $region39: #{tpu_custom_call.1} parent=1 // pred_check_branch
      %615 = sbr.rel (0) target = $region41
    $region40: #{tpu_custom_call.1} parent=1 // pred_region
      %s617 = ssub.s32 16, 16
      %618 = vsyncadd [#allocation3], %s617
      %s620 = sshll.u32 [#allocation5], 4
      %s621 = int_to_ptr.vmem [resolvable:$true] %s620
      %623 = dma.vmem_to_hbm [thread:$0]  %s621, 16, %s8, [#allocation3]
    $region41: #{tpu_custom_call.1} parent=1 // pred_fallthru
      _
    // Predicated region
    $region42: #{tpu_custom_call.1} parent=1 // pred_check
      _
    $region43: #{tpu_custom_call.1} parent=1 // pred_check_branch
      %625 = sbr.rel (0) target = $region45
    $region44: #{tpu_custom_call.1} parent=1 // pred_region
      %626 = dma.done [#allocation3], 16
    $region45: #{tpu_custom_call.1} parent=1 // pred_fallthru
      _
    %627 = vsyncpa [#allocation3], 1
    %628 = vsyncpa [#allocation4], 1

</llo_original>
